<compile_context>
chip_gen: v7x
topology: tpu7x:2x2x1
jax: 0.10.0
libtpu: 0.0.40
codegen_flags: <defaults>
</compile_context>

<pallas_src>
import jax
import jax.numpy as jnp
import numpy as np
from jax.experimental import pallas as pl
from jax.experimental.pallas import tpu as pltpu

N_MINI = 3          # BiggerNN "n"
IN_DIM = 128        # input_dim   (lane-dense)
HID_DIM = 128       # hidden_dim  (lane-dense)
OUT_DIM = 128       # output_dim  (lane-dense)
BATCH = 256
TILE_B = 256        # one full-batch block -> grid=(1,) at BATCH=256


# ------------------------------- kernel ------------------------------------

def biggernn_kernel(x_ref, w_ref, b_ref, o_ref):
    """h = x; for fused layer i: (ReLU if i>0) -> h @ W[i] + b[i]."""
    n_layers = w_ref.shape[0]          # static
    h = x_ref[...]                     # f32 activations / accumulator
    for i in range(n_layers):          # static unroll, n_layers is small
        if i > 0:
            h = jnp.maximum(h, 0.0)    # ReLU between fused layers (f32 VPU)
        # bf16 operands into the MXU, f32 accumulation, f32 bias add.
        h = jnp.dot(h.astype(w_ref.dtype), w_ref[i],
                    preferred_element_type=jnp.float32) + b_ref[i]
    o_ref[...] = h.astype(o_ref.dtype)


def biggernn_forward(x, w_packed, b_packed, *, tile_b=TILE_B):
    """Fused BiggerNN forward as one Pallas call.

    w_packed: (L, D, D) bf16 fused weights, b_packed: (L, 1, D) f32 biases.
    """
    batch, in_dim = x.shape
    tile_b = min(tile_b, batch)
    assert batch % tile_b == 0, "batch must be a multiple of the batch tile"
    n_layers, _, out_dim = w_packed.shape
    grid_b = batch // tile_b

    # Only shard the batch axis across v7x's two TensorCores once each core
    # gets a meaningful amount of work (>= ~512 rows); at small batch the
    # per-core weight re-DMA + launch overhead dominates.
    semantics = ("parallel",) if grid_b >= 4 else ("arbitrary",)

    flops = 2 * batch * in_dim * out_dim * n_layers     # all widths equal here
    bytes_accessed = (x.size * x.dtype.itemsize
                      + w_packed.size * w_packed.dtype.itemsize
                      + b_packed.size * b_packed.dtype.itemsize
                      + batch * out_dim * 4)

    return pl.pallas_call(
        biggernn_kernel,
        out_shape=jax.ShapeDtypeStruct((batch, out_dim), jnp.float32),
        grid=(grid_b,),
        in_specs=[
            # batch tile of the activations
            pl.BlockSpec((tile_b, in_dim), lambda i: (i, 0)),
            # packed weights / biases: full arrays, constant index map ->
            # resident in VMEM across all grid steps (no re-DMA per tile).
            pl.BlockSpec(w_packed.shape, lambda i: (0, 0, 0)),
            pl.BlockSpec(b_packed.shape, lambda i: (0, 0, 0)),
        ],
        out_specs=pl.BlockSpec((tile_b, out_dim), lambda i: (i, 0)),
        compiler_params=pltpu.CompilerParams(dimension_semantics=semantics),
        cost_estimate=pl.CostEstimate(flops=flops, transcendentals=0,
                                      bytes_accessed=bytes_accessed),
    )(x, w_packed, b_packed)


# ----------------------------- parameters ----------------------------------

def xavier_uniform(key, fan_in, fan_out):
    limit = np.sqrt(6.0 / (fan_in + fan_out))
    return jax.random.uniform(key, (fan_in, fan_out), jnp.float32, -limit, limit)


def make_raw_params(key, n, in_dim, hid_dim, out_dim):
    """Unfused BiggerNN parameters (same structure as the PyTorch module)."""
    n_lin = 2 + 2 * n
    keys = jax.random.split(key, 2 * n_lin)
    it = iter(range(2 * n_lin))

    def linear(fan_in, fan_out):
        kw, kb = keys[next(it)], keys[next(it)]
        w = xavier_uniform(kw, fan_in, fan_out)
        b = jax.random.uniform(kb, (1, fan_out), jnp.float32, -0.05, 0.05)
        return w, b

    w_in, b_in = linear(in_dim, hid_dim)
    minis = []
    for _ in range(n):
        w1, b1 = linear(hid_dim, hid_dim)
        w2, b2 = linear(hid_dim, hid_dim)
        minis.append((w1, b1, w2, b2))
    w_fc, b_fc = linear(hid_dim, out_dim)
    return {"w_in": w_in, "b_in": b_in, "minis": minis,
            "w_fc": w_fc, "b_fc": b_fc}


def fuse_and_pack_params(raw):
    """Fold consecutive Linears with no activation between them (in float64),
    then pack the n+1 fused layers into one weight and one bias array.

    BiggerNN's linear chain has ReLU only after each mini.fc1, so it collapses
    to n+1 fused (W, b) pairs with a ReLU before every layer except the first.
    Folding is done once on host in float64 (fold precision does not depend on
    TPU matmul precision), then cast to bf16 (weights) / f32 (biases).
    """
    f64 = lambda a: np.asarray(a, dtype=np.float64)
    chain = [(f64(raw["w_in"]), f64(raw["b_in"]), False)]   # (W, b, relu_after)
    for (w1, b1, w2, b2) in raw["minis"]:
        chain.append((f64(w1), f64(b1), True))
        chain.append((f64(w2), f64(b2), False))
    chain.append((f64(raw["w_fc"]), f64(raw["b_fc"]), False))

    fused = []
    cur_w, cur_b, cur_relu = chain[0]
    for w, b, relu_after in chain[1:]:
        if cur_relu:                      # activation boundary: flush
            fused.append((cur_w, cur_b))
            cur_w, cur_b, cur_relu = w, b, relu_after
        else:                             # fold two Linears into one
            cur_b = cur_b @ w + b
            cur_w = cur_w @ w
            cur_relu = relu_after
    fused.append((cur_w, cur_b))

    assert len({w.shape for w, _ in fused}) == 1, "packing needs equal widths"
    w_packed = jnp.asarray(np.stack([w for w, _ in fused]).astype(np.float32),
                           dtype=jnp.bfloat16)              # MXU operands
    b_packed = jnp.asarray(np.stack([b for _, b in fused]).astype(np.float32),
                           dtype=jnp.float32)                # f32 bias adds
    return w_packed, b_packed


# ------------------------------ reference -----------------------------------

def reference_forward(x, raw):
    """Unfused float64 reference of the original BiggerNN forward."""
    f64 = lambda a: np.asarray(a, dtype=np.float64)
    h = f64(x) @ f64(raw["w_in"]) + f64(raw["b_in"])
    for (w1, b1, w2, b2) in raw["minis"]:
        h = np.maximum(h @ f64(w1) + f64(b1), 0.0) @ f64(w2) + f64(b2)
    return h @ f64(raw["w_fc"]) + f64(raw["b_fc"])


if __name__ == "__main__":
    key = jax.random.PRNGKey(0)
    k_x, k_p = jax.random.split(key)
    x = jax.random.normal(k_x, (BATCH, IN_DIM), jnp.float32)
    raw = make_raw_params(k_p, N_MINI, IN_DIM, HID_DIM, OUT_DIM)

    w_packed, b_packed = fuse_and_pack_params(raw)   # one-time f64 fold
    out = biggernn_forward(x, w_packed, b_packed)
    out = jax.block_until_ready(out)

    ref = reference_forward(x, raw)
    # Tolerance dominated by the intentional bf16 weight/activation operands
    # (4 chained 128-wide matmuls, outputs ~O(1)); f32 accumulation keeps the
    # remaining error negligible.
    np.testing.assert_allclose(np.asarray(out, dtype=np.float64), ref,
                               rtol=5e-2, atol=5e-2)
    print("KERNEL_OK")
</pallas_src>

<mosaic_0001>
module attributes {stable_mosaic.version = 11 : i64} {
  func.func @biggernn_kernel(%arg0: i32, %arg1: memref<256x128xf32, #tpu.memory_space<vmem>>, %arg2: memref<4x128x128xbf16, #tpu.memory_space<vmem>>, %arg3: memref<4x1x128xf32, #tpu.memory_space<vmem>>, %arg4: memref<256x128xf32, #tpu.memory_space<vmem>>) attributes {dimension_semantics = [#tpu.dimension_semantics<arbitrary>], iteration_bounds = array<i64: 1>, scalar_prefetch = 0 : i64, scratch_operands = 0 : i64, tpu.core_type = #tpu.core_type<tc>, window_params = [{transform_indices = @transform_0, window_bounds = array<i64: 256, 128>}, {pipeline_mode = #tpu.pipeline_mode<synchronous>, transform_indices = @transform_1, window_bounds = array<i64: 4, 128, 128>}, {pipeline_mode = #tpu.pipeline_mode<synchronous>, transform_indices = @transform_2, window_bounds = array<i64: 4, 1, 128>}, {transform_indices = @transform_3, window_bounds = array<i64: 256, 128>}]} {
    %c0 = arith.constant 0 : index
    %c0_0 = arith.constant 0 : index
    %0 = vector.load %arg1[%c0, %c0_0] : memref<256x128xf32, #tpu.memory_space<vmem>>, vector<256x128xf32>
    %1 = arith.truncf %0 : vector<256x128xf32> to vector<256x128xbf16>
    %c0_1 = arith.constant 0 : index
    %c0_2 = arith.constant 0 : index
    %c0_3 = arith.constant 0 : index
    %2 = vector.load %arg2[%c0_1, %c0_2, %c0_3] : memref<4x128x128xbf16, #tpu.memory_space<vmem>>, vector<1x128x128xbf16>
    %3 = vector.shape_cast %2 : vector<1x128x128xbf16> to vector<128x128xbf16>
    %cst = arith.constant dense<0.000000e+00> : vector<256x128xf32>
    %4 = tpu.matmul %1, %3, %cst {dimension_numbers = #tpu.dot_dimension_numbers<[1], [0], [0], [1], [0, 0, 1, 1], [], []>} : vector<256x128xbf16>, vector<128x128xbf16>, vector<256x128xf32> -> vector<256x128xf32>
    %c0_4 = arith.constant 0 : index
    %c0_5 = arith.constant 0 : index
    %c0_6 = arith.constant 0 : index
    %5 = vector.load %arg3[%c0_4, %c0_5, %c0_6] : memref<4x1x128xf32, #tpu.memory_space<vmem>>, vector<1x1x128xf32>
    %6 = vector.shape_cast %5 : vector<1x1x128xf32> to vector<1x128xf32>
    %7 = vector.broadcast %6 : vector<1x128xf32> to vector<256x128xf32>
    %8 = arith.addf %4, %7 : vector<256x128xf32>
    %cst_7 = arith.constant 0.000000e+00 : f32
    %9 = vector.broadcast %cst_7 : f32 to vector<256x128xf32>
    %10 = arith.maximumf %8, %9 : vector<256x128xf32>
    %11 = arith.truncf %10 : vector<256x128xf32> to vector<256x128xbf16>
    %c1 = arith.constant 1 : index
    %c0_8 = arith.constant 0 : index
    %c0_9 = arith.constant 0 : index
    %12 = vector.load %arg2[%c1, %c0_8, %c0_9] : memref<4x128x128xbf16, #tpu.memory_space<vmem>>, vector<1x128x128xbf16>
    %13 = vector.shape_cast %12 : vector<1x128x128xbf16> to vector<128x128xbf16>
    %cst_10 = arith.constant dense<0.000000e+00> : vector<256x128xf32>
    %14 = tpu.matmul %11, %13, %cst_10 {dimension_numbers = #tpu.dot_dimension_numbers<[1], [0], [0], [1], [0, 0, 1, 1], [], []>} : vector<256x128xbf16>, vector<128x128xbf16>, vector<256x128xf32> -> vector<256x128xf32>
    %c1_11 = arith.constant 1 : index
    %c0_12 = arith.constant 0 : index
    %c0_13 = arith.constant 0 : index
    %15 = vector.load %arg3[%c1_11, %c0_12, %c0_13] : memref<4x1x128xf32, #tpu.memory_space<vmem>>, vector<1x1x128xf32>
    %16 = vector.shape_cast %15 : vector<1x1x128xf32> to vector<1x128xf32>
    %17 = vector.broadcast %16 : vector<1x128xf32> to vector<256x128xf32>
    %18 = arith.addf %14, %17 : vector<256x128xf32>
    %cst_14 = arith.constant 0.000000e+00 : f32
    %19 = vector.broadcast %cst_14 : f32 to vector<256x128xf32>
    %20 = arith.maximumf %18, %19 : vector<256x128xf32>
    %21 = arith.truncf %20 : vector<256x128xf32> to vector<256x128xbf16>
    %c2 = arith.constant 2 : index
    %c0_15 = arith.constant 0 : index
    %c0_16 = arith.constant 0 : index
    %22 = vector.load %arg2[%c2, %c0_15, %c0_16] : memref<4x128x128xbf16, #tpu.memory_space<vmem>>, vector<1x128x128xbf16>
    %23 = vector.shape_cast %22 : vector<1x128x128xbf16> to vector<128x128xbf16>
    %cst_17 = arith.constant dense<0.000000e+00> : vector<256x128xf32>
    %24 = tpu.matmul %21, %23, %cst_17 {dimension_numbers = #tpu.dot_dimension_numbers<[1], [0], [0], [1], [0, 0, 1, 1], [], []>} : vector<256x128xbf16>, vector<128x128xbf16>, vector<256x128xf32> -> vector<256x128xf32>
    %c2_18 = arith.constant 2 : index
    %c0_19 = arith.constant 0 : index
    %c0_20 = arith.constant 0 : index
    %25 = vector.load %arg3[%c2_18, %c0_19, %c0_20] : memref<4x1x128xf32, #tpu.memory_space<vmem>>, vector<1x1x128xf32>
    %26 = vector.shape_cast %25 : vector<1x1x128xf32> to vector<1x128xf32>
    %27 = vector.broadcast %26 : vector<1x128xf32> to vector<256x128xf32>
    %28 = arith.addf %24, %27 : vector<256x128xf32>
    %cst_21 = arith.constant 0.000000e+00 : f32
    %29 = vector.broadcast %cst_21 : f32 to vector<256x128xf32>
    %30 = arith.maximumf %28, %29 : vector<256x128xf32>
    %31 = arith.truncf %30 : vector<256x128xf32> to vector<256x128xbf16>
    %c3 = arith.constant 3 : index
    %c0_22 = arith.constant 0 : index
    %c0_23 = arith.constant 0 : index
    %32 = vector.load %arg2[%c3, %c0_22, %c0_23] : memref<4x128x128xbf16, #tpu.memory_space<vmem>>, vector<1x128x128xbf16>
    %33 = vector.shape_cast %32 : vector<1x128x128xbf16> to vector<128x128xbf16>
    %cst_24 = arith.constant dense<0.000000e+00> : vector<256x128xf32>
    %34 = tpu.matmul %31, %33, %cst_24 {dimension_numbers = #tpu.dot_dimension_numbers<[1], [0], [0], [1], [0, 0, 1, 1], [], []>} : vector<256x128xbf16>, vector<128x128xbf16>, vector<256x128xf32> -> vector<256x128xf32>
    %c3_25 = arith.constant 3 : index
    %c0_26 = arith.constant 0 : index
    %c0_27 = arith.constant 0 : index
    %35 = vector.load %arg3[%c3_25, %c0_26, %c0_27] : memref<4x1x128xf32, #tpu.memory_space<vmem>>, vector<1x1x128xf32>
    %36 = vector.shape_cast %35 : vector<1x1x128xf32> to vector<1x128xf32>
    %37 = vector.broadcast %36 : vector<1x128xf32> to vector<256x128xf32>
    %38 = arith.addf %34, %37 : vector<256x128xf32>
    %c0_28 = arith.constant 0 : index
    %c0_29 = arith.constant 0 : index
    %39 = vector.load %arg4[%c0_28, %c0_29] : memref<256x128xf32, #tpu.memory_space<vmem>>, vector<256x128xf32>
    tpu.vector_store %arg4[%c0_28, %c0_29], %38 {strides = array<i32>} : memref<256x128xf32, #tpu.memory_space<vmem>>, vector<256x128xf32>,
    return
  }
  func.func @transform_0(%arg0: i32) -> (i32, i32) {
    %c0_i32 = arith.constant 0 : i32
    %c0_i32_0 = arith.constant 0 : i32
    return %arg0, %c0_i32 : i32, i32
  }
  func.func @transform_1(%arg0: i32) -> (i32, i32, i32) {
    %c0_i32 = arith.constant 0 : i32
    %c0_i32_0 = arith.constant 0 : i32
    %c0_i32_1 = arith.constant 0 : i32
    %c0_i32_2 = arith.constant 0 : i32
    return %c0_i32, %c0_i32_0, %c0_i32_1 : i32, i32, i32
  }
  func.func @transform_2(%arg0: i32) -> (i32, i32, i32) {
    %c0_i32 = arith.constant 0 : i32
    %c0_i32_0 = arith.constant 0 : i32
    %c0_i32_1 = arith.constant 0 : i32
    %c0_i32_2 = arith.constant 0 : i32
    return %c0_i32, %c0_i32_0, %c0_i32_1 : i32, i32, i32
  }
  func.func @transform_3(%arg0: i32) -> (i32, i32) {
    %c0_i32 = arith.constant 0 : i32
    %c0_i32_0 = arith.constant 0 : i32
    return %arg0, %c0_i32 : i32, i32
  }
}

</mosaic_0001>

<llo_original>
// kernel: tpu_custom_call.1
$region0: #{tpu_custom_call.1}
  #allocation0 [shape = 'u32[]', space=smem, size = 0x4, offset = 0x4, fixed_abs, tag = 'smem constant byte address 0x4 - core index']
  #allocation1 [shape = 'u32[144,128]{1,0:T(1,128)}', space=vmem, size = 0x12000, scoped, tag = 'internal scratch']
  %s0 = inlined_call_operand.hbm [shape: f32[256,128], index: 0, kind: input, shape index: {}]
  %s1 = inlined_call_operand.hbm [shape: bf16[4,128,128], index: 1, kind: input, shape index: {}]
  %s2 = inlined_call_operand.vmem [shape: f32[4,1,128], index: 2, kind: input, shape index: {}]
  %s3 = inlined_call_operand.hbm [shape: f32[256,128], index: 3, kind: output, shape index: {}]
  %s4 = sld [smem:[#allocation0]]
  $region30: #{tpu_custom_call.1} parent=0
    _
  %s6 = ssub.s32 1, %s4
  %s7 = scalar_select 0, %s6, %s4
  $region1: #{tpu_custom_call.1} parent=0
    #allocation2 [shape = 'u8[131072]{0}', space=vmem, size = 0x20000, scoped, tag = 'input window, operand 0, single buffered']
    #allocation3 [shape = 's32[1]{0}', space=sflag, size = 0x4, scoped, tag = 'scoped memory for tpu_custom_call.1']
    #allocation4 [shape = 's32[1]{0}', space=sflag, size = 0x4, scoped, tag = 'scoped memory for tpu_custom_call.1']
    #allocation5 [shape = 'u8[131072]{0}', space=vmem, size = 0x20000, scoped, tag = 'input window, operand 1, single buffered']
    #allocation6 [shape = 's32[1]{0}', space=sflag, size = 0x4, scoped, tag = 'scoped memory for tpu_custom_call.1']
    #allocation7 [shape = 'u8[131072]{0}', space=vmem, size = 0x20000, scoped, tag = 'output window, operand 0, single buffered']
    %8 = vsyncpa [#allocation3], 0
    %9 = vsyncpa [#allocation6], 0
    %10 = vsyncpa [#allocation4], 0
    // Predicated region
    $region2: #{tpu_custom_call.1} parent=1 // pred_check
      _
    $region3: #{tpu_custom_call.1} parent=1 // pred_check_branch
      %12 = sbr.rel (0) target = $region5
    $region4: #{tpu_custom_call.1} parent=1 // pred_region
      %s14 = ssub.s32 4096, 4096
      %15 = vsyncadd [#allocation3], %s14
      %s16 = sshll.u32 [#allocation2], 4
      %s17 = int_to_ptr.vmem [resolvable:$true] %s16
      %22 = dma.hbm_to_vmem [thread:$0]  %s0, 4096, %s17, [#allocation3], 128, 128, 8
    $region5: #{tpu_custom_call.1} parent=1 // pred_fallthru
      _
    // Predicated region
    $region6: #{tpu_custom_call.1} parent=1 // pred_check
      _
    $region7: #{tpu_custom_call.1} parent=1 // pred_check_branch
      %24 = sbr.rel (0) target = $region9
    $region8: #{tpu_custom_call.1} parent=1 // pred_region
      %s26 = ssub.s32 4096, 4096
      %27 = vsyncadd [#allocation6], %s26
      %s28 = sshll.u32 [#allocation5], 4
      %s29 = int_to_ptr.vmem [resolvable:$true] %s28
      %34 = dma.hbm_to_vmem [thread:$0]  %s1, 4096, %s29, [#allocation6], 64, 64, 4
    $region9: #{tpu_custom_call.1} parent=1 // pred_fallthru
      _
    // Predicated region
    $region10: #{tpu_custom_call.1} parent=1 // pred_check
      _
    $region11: #{tpu_custom_call.1} parent=1 // pred_check_branch
      %36 = sbr.rel (0) target = $region13
    $region12: #{tpu_custom_call.1} parent=1 // pred_region
      _
    $region13: #{tpu_custom_call.1} parent=1 // pred_fallthru
      _
    // Predicated region
    $region14: #{tpu_custom_call.1} parent=1 // pred_check
      _
    $region15: #{tpu_custom_call.1} parent=1 // pred_check_branch
      %38 = sbr.rel (0) target = $region17
    $region16: #{tpu_custom_call.1} parent=1 // pred_region
      %39 = dma.done [#allocation3], 4096
    $region17: #{tpu_custom_call.1} parent=1 // pred_fallthru
      _
    // Predicated region
    $region18: #{tpu_custom_call.1} parent=1 // pred_check
      _
    $region19: #{tpu_custom_call.1} parent=1 // pred_check_branch
      %41 = sbr.rel (0) target = $region21
    $region20: #{tpu_custom_call.1} parent=1 // pred_region
      %42 = dma.done [#allocation6], 4096
    $region21: #{tpu_custom_call.1} parent=1 // pred_fallthru
      _
    %v44 = vld [vmem:[#allocation2] sm:$0xff]
    %v45 = vld [vmem:[#allocation2 + $0x8] sm:$0xff]
    %v46 = vld [vmem:[#allocation2 + $0x10] sm:$0xff]
    %v47 = vld [vmem:[#allocation2 + $0x18] sm:$0xff]
    %v48 = vld [vmem:[#allocation2 + $0x20] sm:$0xff]
    %v49 = vld [vmem:[#allocation2 + $0x28] sm:$0xff]
    %v50 = vld [vmem:[#allocation2 + $0x30] sm:$0xff]
    %v51 = vld [vmem:[#allocation2 + $0x38] sm:$0xff]
    %v52 = vld [vmem:[#allocation2 + $0x40] sm:$0xff]
    %v53 = vld [vmem:[#allocation2 + $0x48] sm:$0xff]
    %v54 = vld [vmem:[#allocation2 + $0x50] sm:$0xff]
    %v55 = vld [vmem:[#allocation2 + $0x58] sm:$0xff]
    %v56 = vld [vmem:[#allocation2 + $0x60] sm:$0xff]
    %v57 = vld [vmem:[#allocation2 + $0x68] sm:$0xff]
    %v58 = vld [vmem:[#allocation2 + $0x70] sm:$0xff]
    %v59 = vld [vmem:[#allocation2 + $0x78] sm:$0xff]
    %v60 = vld [vmem:[#allocation2 + $0x80] sm:$0xff]
    %v61 = vld [vmem:[#allocation2 + $0x88] sm:$0xff]
    %v62 = vld [vmem:[#allocation2 + $0x90] sm:$0xff]
    %v63 = vld [vmem:[#allocation2 + $0x98] sm:$0xff]
    %v64 = vld [vmem:[#allocation2 + $0xa0] sm:$0xff]
    %v65 = vld [vmem:[#allocation2 + $0xa8] sm:$0xff]
    %v66 = vld [vmem:[#allocation2 + $0xb0] sm:$0xff]
    %v67 = vld [vmem:[#allocation2 + $0xb8] sm:$0xff]
    %v68 = vld [vmem:[#allocation2 + $0xc0] sm:$0xff]
    %v69 = vld [vmem:[#allocation2 + $0xc8] sm:$0xff]
    %v70 = vld [vmem:[#allocation2 + $0xd0] sm:$0xff]
    %v71 = vld [vmem:[#allocation2 + $0xd8] sm:$0xff]
    %v72 = vld [vmem:[#allocation2 + $0xe0] sm:$0xff]
    %v73 = vld [vmem:[#allocation2 + $0xe8] sm:$0xff]
    %v74 = vld [vmem:[#allocation2 + $0xf0] sm:$0xff]
    %v75 = vld [vmem:[#allocation2 + $0xf8] sm:$0xff]
    %v76 = vpack.c.bf16 %v45, %v44
    %v77 = vpack.c.bf16 %v47, %v46
    %v78 = vpack.c.bf16 %v49, %v48
    %v79 = vpack.c.bf16 %v51, %v50
    %v80 = vpack.c.bf16 %v53, %v52
    %v81 = vpack.c.bf16 %v55, %v54
    %v82 = vpack.c.bf16 %v57, %v56
    %v83 = vpack.c.bf16 %v59, %v58
    %v84 = vpack.c.bf16 %v61, %v60
    %v85 = vpack.c.bf16 %v63, %v62
    %v86 = vpack.c.bf16 %v65, %v64
    %v87 = vpack.c.bf16 %v67, %v66
    %v88 = vpack.c.bf16 %v69, %v68
    %v89 = vpack.c.bf16 %v71, %v70
    %v90 = vpack.c.bf16 %v73, %v72
    %v91 = vpack.c.bf16 %v75, %v74
    %v92 = vld [vmem:[#allocation5] sm:$0xf]
    %v93 = vld [vmem:[#allocation5 + $0x4] sm:$0xf]
    %v94 = vld [vmem:[#allocation5 + $0x8] sm:$0xf]
    %v95 = vld [vmem:[#allocation5 + $0xc] sm:$0xf]
    %v96 = vld [vmem:[#allocation5 + $0x10] sm:$0xf]
    %v97 = vld [vmem:[#allocation5 + $0x14] sm:$0xf]
    %v98 = vld [vmem:[#allocation5 + $0x18] sm:$0xf]
    %v99 = vld [vmem:[#allocation5 + $0x1c] sm:$0xf]
    %v100 = vld [vmem:[#allocation5 + $0x20] sm:$0xf]
    %v101 = vld [vmem:[#allocation5 + $0x24] sm:$0xf]
    %v102 = vld [vmem:[#allocation5 + $0x28] sm:$0xf]
    %v103 = vld [vmem:[#allocation5 + $0x2c] sm:$0xf]
    %v104 = vld [vmem:[#allocation5 + $0x30] sm:$0xf]
    %v105 = vld [vmem:[#allocation5 + $0x34] sm:$0xf]
    %v106 = vld [vmem:[#allocation5 + $0x38] sm:$0xf]
    %v107 = vld [vmem:[#allocation5 + $0x3c] sm:$0xf]
    %v108 = vld [vmem:[%s2] sm:$0x1]
    %v110 = vlaneseq
    %v111 = vshrl.u32 %v110, 7
    %v112 = vsub.s32 0, %v111
    %v113 = vrot.slane %v108, %v112
    %v131 = vunpack.c.l.b16 %v92
    %v132 = vunpack.c.l.b16 %v93
    %v133 = vunpack.c.l.b16 %v94
    %v134 = vunpack.c.l.b16 %v95
    %v135 = vunpack.c.l.b16 %v96
    %v136 = vunpack.c.l.b16 %v97
    %v137 = vunpack.c.l.b16 %v98
    %v138 = vunpack.c.l.b16 %v99
    %v139 = vunpack.c.l.b16 %v100
    %v140 = vunpack.c.l.b16 %v101
    %v141 = vunpack.c.l.b16 %v102
    %v142 = vunpack.c.l.b16 %v103
    %v143 = vunpack.c.l.b16 %v104
    %v144 = vunpack.c.l.b16 %v105
    %v145 = vunpack.c.l.b16 %v106
    %v146 = vunpack.c.l.b16 %v107
    %v147 = vpack.c.b16 %v132, %v131
    %v148 = vpack.c.b16 %v134, %v133
    %v149 = vpack.c.b16 %v136, %v135
    %v150 = vpack.c.b16 %v138, %v137
    %v151 = vpack.c.b16 %v140, %v139
    %v152 = vpack.c.b16 %v142, %v141
    %v153 = vpack.c.b16 %v144, %v143
    %v154 = vpack.c.b16 %v146, %v145
    %163 = vmatprep.subr.bf16.mxu0 0
    %164 = vmatpush1.bf16.msra.mxu0 %v147
    %165 = vmatprep.subr.bf16.mxu0 0
    %166 = vmatpush1.bf16.msra.mxu0 %v148
    %167 = vmatprep.subr.bf16.mxu0 0
    %168 = vmatpush1.bf16.msra.mxu0 %v149
    %169 = vmatprep.subr.bf16.mxu0 0
    %170 = vmatpush1.bf16.msra.mxu0 %v150
    %171 = vmatprep.subr.bf16.mxu0 0
    %172 = vmatpush1.bf16.msra.mxu0 %v151
    %173 = vmatprep.subr.bf16.mxu0 0
    %174 = vmatpush1.bf16.msra.mxu0 %v152
    %175 = vmatprep.subr.bf16.mxu0 0
    %176 = vmatpush1.bf16.msra.mxu0 %v153
    %177 = vmatprep.subr.bf16.mxu0 0
    %178 = vmatpush1.bf16.msra.mxu0 %v154
    %179 = vmatprep.subr.bf16.mxu0 0
    %180 = vmatpush1.bf16.msra.mxu0 0
    %181 = vmatprep.subr.bf16.mxu0 0
    %182 = vmatpush1.bf16.msra.mxu0 0
    %183 = vmatprep.subr.bf16.mxu0 0
    %184 = vmatpush1.bf16.msra.mxu0 0
    %185 = vmatprep.subr.bf16.mxu0 0
    %186 = vmatpush1.bf16.msra.mxu0 0
    %187 = vmatprep.subr.bf16.mxu0 0
    %188 = vmatpush1.bf16.msra.mxu0 0
    %189 = vmatprep.subr.bf16.mxu0 0
    %190 = vmatpush1.bf16.msra.mxu0 0
    %191 = vmatprep.subr.bf16.mxu0 0
    %192 = vmatpush1.bf16.msra.mxu0 0
    %193 = vmatprep.subr.bf16.mxu0 0
    %194 = vmatpush1.bf16.msra.mxu0 0
    %195 = vmatprep.mubr.bf16.mxu0 0
    %196 = vmatmul.mubr.bf16.gmra.mrb[0].mxu0 %v76
    %v197 = vpop.f32.mrb[0].mxu0
    %v198 = vadd.f32 %v113, %v197
    %v199 = vpop.f32.mrb[0].mxu0
    %v200 = vpop.f32.mrb[0].mxu0
    %v201 = vadd.f32 %v113, %v200
    %v202 = vpop.f32.mrb[0].mxu0
    %203 = vmatprep.mubr.bf16.mxu0 0
    %204 = vmatmul.mubr.bf16.gmra.mrb[0].mxu0 %v77
    %v205 = vpop.f32.mrb[0].mxu0
    %v206 = vadd.f32 %v113, %v205
    %v207 = vpop.f32.mrb[0].mxu0
    %v208 = vpop.f32.mrb[0].mxu0
    %v209 = vadd.f32 %v113, %v208
    %v210 = vpop.f32.mrb[0].mxu0
    %211 = vmatprep.mubr.bf16.mxu0 0
    %212 = vmatmul.mubr.bf16.gmra.mrb[0].mxu0 %v78
    %v213 = vpop.f32.mrb[0].mxu0
    %v214 = vadd.f32 %v113, %v213
    %v215 = vpop.f32.mrb[0].mxu0
    %v216 = vpop.f32.mrb[0].mxu0
    %v217 = vadd.f32 %v113, %v216
    %v218 = vpop.f32.mrb[0].mxu0
    %219 = vmatprep.mubr.bf16.mxu0 0
    %220 = vmatmul.mubr.bf16.gmra.mrb[0].mxu0 %v79
    %v221 = vpop.f32.mrb[0].mxu0
    %v222 = vadd.f32 %v113, %v221
    %v223 = vpop.f32.mrb[0].mxu0
    %v224 = vpop.f32.mrb[0].mxu0
    %v225 = vadd.f32 %v113, %v224
    %v226 = vpop.f32.mrb[0].mxu0
    %227 = vmatprep.mubr.bf16.mxu0 0
    %228 = vmatmul.mubr.bf16.gmra.mrb[0].mxu0 %v80
    %v229 = vpop.f32.mrb[0].mxu0
    %v230 = vadd.f32 %v113, %v229
    %v231 = vpop.f32.mrb[0].mxu0
    %v232 = vpop.f32.mrb[0].mxu0
    %v233 = vadd.f32 %v113, %v232
    %v234 = vpop.f32.mrb[0].mxu0
    %235 = vmatprep.mubr.bf16.mxu0 0
    %236 = vmatmul.mubr.bf16.gmra.mrb[0].mxu0 %v81
    %v237 = vpop.f32.mrb[0].mxu0
    %v238 = vadd.f32 %v113, %v237
    %v239 = vpop.f32.mrb[0].mxu0
    %v240 = vpop.f32.mrb[0].mxu0
    %v241 = vadd.f32 %v113, %v240
    %v242 = vpop.f32.mrb[0].mxu0
    %243 = vmatprep.mubr.bf16.mxu0 0
    %244 = vmatmul.mubr.bf16.gmra.mrb[0].mxu0 %v82
    %v245 = vpop.f32.mrb[0].mxu0
    %v246 = vadd.f32 %v113, %v245
    %v247 = vpop.f32.mrb[0].mxu0
    %v248 = vpop.f32.mrb[0].mxu0
    %v249 = vadd.f32 %v113, %v248
    %v250 = vpop.f32.mrb[0].mxu0
    %251 = vmatprep.mubr.bf16.mxu0 0
    %252 = vmatmul.mubr.bf16.gmra.mrb[0].mxu0 %v83
    %v253 = vpop.f32.mrb[0].mxu0
    %v254 = vadd.f32 %v113, %v253
    %v255 = vpop.f32.mrb[0].mxu0
    %v256 = vpop.f32.mrb[0].mxu0
    %v257 = vadd.f32 %v113, %v256
    %v258 = vpop.f32.mrb[0].mxu0
    %259 = vmatprep.mubr.bf16.mxu0 0
    %260 = vmatmul.mubr.bf16.gmra.mrb[0].mxu0 %v84
    %v261 = vpop.f32.mrb[0].mxu0
    %v262 = vadd.f32 %v113, %v261
    %v263 = vpop.f32.mrb[0].mxu0
    %v264 = vpop.f32.mrb[0].mxu0
    %v265 = vadd.f32 %v113, %v264
    %v266 = vpop.f32.mrb[0].mxu0
    %267 = vmatprep.mubr.bf16.mxu0 0
    %268 = vmatmul.mubr.bf16.gmra.mrb[0].mxu0 %v85
    %v269 = vpop.f32.mrb[0].mxu0
    %v270 = vadd.f32 %v113, %v269
    %v271 = vpop.f32.mrb[0].mxu0
    %v272 = vpop.f32.mrb[0].mxu0
    %v273 = vadd.f32 %v113, %v272
    %v274 = vpop.f32.mrb[0].mxu0
    %275 = vmatprep.mubr.bf16.mxu0 0
    %276 = vmatmul.mubr.bf16.gmra.mrb[0].mxu0 %v86
    %v277 = vpop.f32.mrb[0].mxu0
    %v278 = vadd.f32 %v113, %v277
    %v279 = vpop.f32.mrb[0].mxu0
    %v280 = vpop.f32.mrb[0].mxu0
    %v281 = vadd.f32 %v113, %v280
    %v282 = vpop.f32.mrb[0].mxu0
    %283 = vmatprep.mubr.bf16.mxu0 0
    %284 = vmatmul.mubr.bf16.gmra.mrb[0].mxu0 %v87
    %v285 = vpop.f32.mrb[0].mxu0
    %v286 = vadd.f32 %v113, %v285
    %v287 = vpop.f32.mrb[0].mxu0
    %v288 = vpop.f32.mrb[0].mxu0
    %v289 = vadd.f32 %v113, %v288
    %v290 = vpop.f32.mrb[0].mxu0
    %291 = vmatprep.mubr.bf16.mxu0 0
    %292 = vmatmul.mubr.bf16.gmra.mrb[0].mxu0 %v88
    %v293 = vpop.f32.mrb[0].mxu0
    %v294 = vadd.f32 %v113, %v293
    %v295 = vpop.f32.mrb[0].mxu0
    %v296 = vpop.f32.mrb[0].mxu0
    %v297 = vadd.f32 %v113, %v296
    %v298 = vpop.f32.mrb[0].mxu0
    %299 = vmatprep.mubr.bf16.mxu0 0
    %300 = vmatmul.mubr.bf16.gmra.mrb[0].mxu0 %v89
    %v301 = vpop.f32.mrb[0].mxu0
    %v302 = vadd.f32 %v113, %v301
    %v303 = vpop.f32.mrb[0].mxu0
    %v304 = vpop.f32.mrb[0].mxu0
    %v305 = vadd.f32 %v113, %v304
    %v306 = vpop.f32.mrb[0].mxu0
    %307 = vmatprep.mubr.bf16.mxu0 0
    %308 = vmatmul.mubr.bf16.gmra.mrb[0].mxu0 %v90
    %v309 = vpop.f32.mrb[0].mxu0
    %v310 = vadd.f32 %v113, %v309
    %v311 = vpop.f32.mrb[0].mxu0
    %v312 = vpop.f32.mrb[0].mxu0
    %v313 = vadd.f32 %v113, %v312
    %v314 = vpop.f32.mrb[0].mxu0
    %315 = vmatprep.mubr.bf16.mxu0 0
    %316 = vmatmul.mubr.bf16.gmra.mrb[0].mxu0 %v91
    %v317 = vpop.f32.mrb[0].mxu0
    %v318 = vadd.f32 %v113, %v317
    %v319 = vpop.f32.mrb[0].mxu0
    %v320 = vpop.f32.mrb[0].mxu0
    %v321 = vadd.f32 %v113, %v320
    %v322 = vpop.f32.mrb[0].mxu0
    %323 = vdwg.mxu0
    %v324 = vmax.f32 %v198, 0.0
    %v325 = vmax.f32 %v201, 0.0
    %v326 = vmax.f32 %v206, 0.0
    %v327 = vmax.f32 %v209, 0.0
    %v328 = vmax.f32 %v214, 0.0
    %v329 = vmax.f32 %v217, 0.0
    %v330 = vmax.f32 %v222, 0.0
    %v331 = vmax.f32 %v225, 0.0
    %v332 = vmax.f32 %v230, 0.0
    %v333 = vmax.f32 %v233, 0.0
    %v334 = vmax.f32 %v238, 0.0
    %v335 = vmax.f32 %v241, 0.0
    %v336 = vmax.f32 %v246, 0.0
    %v337 = vmax.f32 %v249, 0.0
    %v338 = vmax.f32 %v254, 0.0
    %v339 = vmax.f32 %v257, 0.0
    %v340 = vmax.f32 %v262, 0.0
    %v341 = vmax.f32 %v265, 0.0
    %v342 = vmax.f32 %v270, 0.0
    %v343 = vmax.f32 %v273, 0.0
    %v344 = vmax.f32 %v278, 0.0
    %v345 = vmax.f32 %v281, 0.0
    %v346 = vmax.f32 %v286, 0.0
    %v347 = vmax.f32 %v289, 0.0
    %v348 = vmax.f32 %v294, 0.0
    %v349 = vmax.f32 %v297, 0.0
    %v350 = vmax.f32 %v302, 0.0
    %v351 = vmax.f32 %v305, 0.0
    %v352 = vmax.f32 %v310, 0.0
    %v353 = vmax.f32 %v313, 0.0
    %v354 = vmax.f32 %v318, 0.0
    %v355 = vmax.f32 %v321, 0.0
    %v356 = vpack.c.bf16 %v325, %v324
    %v357 = vpack.c.bf16 %v327, %v326
    %v358 = vpack.c.bf16 %v329, %v328
    %v359 = vpack.c.bf16 %v331, %v330
    %v360 = vpack.c.bf16 %v333, %v332
    %v361 = vpack.c.bf16 %v335, %v334
    %v362 = vpack.c.bf16 %v337, %v336
    %v363 = vpack.c.bf16 %v339, %v338
    %v364 = vpack.c.bf16 %v341, %v340
    %v365 = vpack.c.bf16 %v343, %v342
    %v366 = vpack.c.bf16 %v345, %v344
    %v367 = vpack.c.bf16 %v347, %v346
    %v368 = vpack.c.bf16 %v349, %v348
    %v369 = vpack.c.bf16 %v351, %v350
    %v370 = vpack.c.bf16 %v353, %v352
    %v371 = vpack.c.bf16 %v355, %v354
    %s372 = scalar_lea.vmem [#allocation5], 64
    %v373 = vld [vmem:[%s372] sm:$0xf]
    %v374 = vld [vmem:[%s372 + $0x4] sm:$0xf]
    %v375 = vld [vmem:[%s372 + $0x8] sm:$0xf]
    %v376 = vld [vmem:[%s372 + $0xc] sm:$0xf]
    %v377 = vld [vmem:[%s372 + $0x10] sm:$0xf]
    %v378 = vld [vmem:[%s372 + $0x14] sm:$0xf]
    %v379 = vld [vmem:[%s372 + $0x18] sm:$0xf]
    %v380 = vld [vmem:[%s372 + $0x1c] sm:$0xf]
    %v381 = vld [vmem:[%s372 + $0x20] sm:$0xf]
    %v382 = vld [vmem:[%s372 + $0x24] sm:$0xf]
    %v383 = vld [vmem:[%s372 + $0x28] sm:$0xf]
    %v384 = vld [vmem:[%s372 + $0x2c] sm:$0xf]
    %v385 = vld [vmem:[%s372 + $0x30] sm:$0xf]
    %v386 = vld [vmem:[%s372 + $0x34] sm:$0xf]
    %v387 = vld [vmem:[%s372 + $0x38] sm:$0xf]
    %v388 = vld [vmem:[%s372 + $0x3c] sm:$0xf]
    %s389 = scalar_lea.vmem %s2, 1
    %v390 = vld [vmem:[%s389] sm:$0x1]
    %v392 = vlaneseq
    %v393 = vshrl.u32 %v392, 7
    %v394 = vsub.s32 0, %v393
    %v395 = vrot.slane %v390, %v394
    %v413 = vunpack.c.l.b16 %v373
    %v414 = vunpack.c.l.b16 %v374
    %v415 = vunpack.c.l.b16 %v375
    %v416 = vunpack.c.l.b16 %v376
    %v417 = vunpack.c.l.b16 %v377
    %v418 = vunpack.c.l.b16 %v378
    %v419 = vunpack.c.l.b16 %v379
    %v420 = vunpack.c.l.b16 %v380
    %v421 = vunpack.c.l.b16 %v381
    %v422 = vunpack.c.l.b16 %v382
    %v423 = vunpack.c.l.b16 %v383
    %v424 = vunpack.c.l.b16 %v384
    %v425 = vunpack.c.l.b16 %v385
    %v426 = vunpack.c.l.b16 %v386
    %v427 = vunpack.c.l.b16 %v387
    %v428 = vunpack.c.l.b16 %v388
    %v429 = vpack.c.b16 %v414, %v413
    %v430 = vpack.c.b16 %v416, %v415
    %v431 = vpack.c.b16 %v418, %v417
    %v432 = vpack.c.b16 %v420, %v419
    %v433 = vpack.c.b16 %v422, %v421
    %v434 = vpack.c.b16 %v424, %v423
    %v435 = vpack.c.b16 %v426, %v425
    %v436 = vpack.c.b16 %v428, %v427
    %445 = vmatprep.subr.bf16.mxu0 0
    %446 = vmatpush1.bf16.msra.mxu0 %v429
    %447 = vmatprep.subr.bf16.mxu0 0
    %448 = vmatpush1.bf16.msra.mxu0 %v430
    %449 = vmatprep.subr.bf16.mxu0 0
    %450 = vmatpush1.bf16.msra.mxu0 %v431
    %451 = vmatprep.subr.bf16.mxu0 0
    %452 = vmatpush1.bf16.msra.mxu0 %v432
    %453 = vmatprep.subr.bf16.mxu0 0
    %454 = vmatpush1.bf16.msra.mxu0 %v433
    %455 = vmatprep.subr.bf16.mxu0 0
    %456 = vmatpush1.bf16.msra.mxu0 %v434
    %457 = vmatprep.subr.bf16.mxu0 0
    %458 = vmatpush1.bf16.msra.mxu0 %v435
    %459 = vmatprep.subr.bf16.mxu0 0
    %460 = vmatpush1.bf16.msra.mxu0 %v436
    %461 = vmatprep.subr.bf16.mxu0 0
    %462 = vmatpush1.bf16.msra.mxu0 0
    %463 = vmatprep.subr.bf16.mxu0 0
    %464 = vmatpush1.bf16.msra.mxu0 0
    %465 = vmatprep.subr.bf16.mxu0 0
    %466 = vmatpush1.bf16.msra.mxu0 0
    %467 = vmatprep.subr.bf16.mxu0 0
    %468 = vmatpush1.bf16.msra.mxu0 0
    %469 = vmatprep.subr.bf16.mxu0 0
    %470 = vmatpush1.bf16.msra.mxu0 0
    %471 = vmatprep.subr.bf16.mxu0 0
    %472 = vmatpush1.bf16.msra.mxu0 0
    %473 = vmatprep.subr.bf16.mxu0 0
    %474 = vmatpush1.bf16.msra.mxu0 0
    %475 = vmatprep.subr.bf16.mxu0 0
    %476 = vmatpush1.bf16.msra.mxu0 0
    %477 = vmatprep.mubr.bf16.mxu0 0
    %478 = vmatmul.mubr.bf16.gmra.mrb[0].mxu0 %v356
    %v479 = vpop.f32.mrb[0].mxu0
    %v480 = vadd.f32 %v395, %v479
    %v481 = vpop.f32.mrb[0].mxu0
    %v482 = vpop.f32.mrb[0].mxu0
    %v483 = vadd.f32 %v395, %v482
    %v484 = vpop.f32.mrb[0].mxu0
    %485 = vmatprep.mubr.bf16.mxu0 0
    %486 = vmatmul.mubr.bf16.gmra.mrb[0].mxu0 %v357
    %v487 = vpop.f32.mrb[0].mxu0
    %v488 = vadd.f32 %v395, %v487
    %v489 = vpop.f32.mrb[0].mxu0
    %v490 = vpop.f32.mrb[0].mxu0
    %v491 = vadd.f32 %v395, %v490
    %v492 = vpop.f32.mrb[0].mxu0
    %493 = vmatprep.mubr.bf16.mxu0 0
    %494 = vmatmul.mubr.bf16.gmra.mrb[0].mxu0 %v358
    %v495 = vpop.f32.mrb[0].mxu0
    %v496 = vadd.f32 %v395, %v495
    %v497 = vpop.f32.mrb[0].mxu0
    %v498 = vpop.f32.mrb[0].mxu0
    %v499 = vadd.f32 %v395, %v498
    %v500 = vpop.f32.mrb[0].mxu0
    %501 = vmatprep.mubr.bf16.mxu0 0
    %502 = vmatmul.mubr.bf16.gmra.mrb[0].mxu0 %v359
    %v503 = vpop.f32.mrb[0].mxu0
    %v504 = vadd.f32 %v395, %v503
    %v505 = vpop.f32.mrb[0].mxu0
    %v506 = vpop.f32.mrb[0].mxu0
    %v507 = vadd.f32 %v395, %v506
    %v508 = vpop.f32.mrb[0].mxu0
    %509 = vmatprep.mubr.bf16.mxu0 0
    %510 = vmatmul.mubr.bf16.gmra.mrb[0].mxu0 %v360
    %v511 = vpop.f32.mrb[0].mxu0
    %v512 = vadd.f32 %v395, %v511
    %v513 = vpop.f32.mrb[0].mxu0
    %v514 = vpop.f32.mrb[0].mxu0
    %v515 = vadd.f32 %v395, %v514
    %v516 = vpop.f32.mrb[0].mxu0
    %517 = vmatprep.mubr.bf16.mxu0 0
    %518 = vmatmul.mubr.bf16.gmra.mrb[0].mxu0 %v361
    %v519 = vpop.f32.mrb[0].mxu0
    %v520 = vadd.f32 %v395, %v519
    %v521 = vpop.f32.mrb[0].mxu0
    %v522 = vpop.f32.mrb[0].mxu0
    %v523 = vadd.f32 %v395, %v522
    %v524 = vpop.f32.mrb[0].mxu0
    %525 = vmatprep.mubr.bf16.mxu0 0
    %526 = vmatmul.mubr.bf16.gmra.mrb[0].mxu0 %v362
    %v527 = vpop.f32.mrb[0].mxu0
    %v528 = vadd.f32 %v395, %v527
    %v529 = vpop.f32.mrb[0].mxu0
    %v530 = vpop.f32.mrb[0].mxu0
    %v531 = vadd.f32 %v395, %v530
    %v532 = vpop.f32.mrb[0].mxu0
    %533 = vmatprep.mubr.bf16.mxu0 0
    %534 = vmatmul.mubr.bf16.gmra.mrb[0].mxu0 %v363
    %v535 = vpop.f32.mrb[0].mxu0
    %v536 = vadd.f32 %v395, %v535
    %v537 = vpop.f32.mrb[0].mxu0
    %v538 = vpop.f32.mrb[0].mxu0
    %v539 = vadd.f32 %v395, %v538
    %v540 = vpop.f32.mrb[0].mxu0
    %541 = vmatprep.mubr.bf16.mxu0 0
    %542 = vmatmul.mubr.bf16.gmra.mrb[0].mxu0 %v364
    %v543 = vpop.f32.mrb[0].mxu0
    %v544 = vadd.f32 %v395, %v543
    %v545 = vpop.f32.mrb[0].mxu0
    %v546 = vpop.f32.mrb[0].mxu0
    %v547 = vadd.f32 %v395, %v546
    %v548 = vpop.f32.mrb[0].mxu0
    %549 = vmatprep.mubr.bf16.mxu0 0
    %550 = vmatmul.mubr.bf16.gmra.mrb[0].mxu0 %v365
    %v551 = vpop.f32.mrb[0].mxu0
    %v552 = vadd.f32 %v395, %v551
    %v553 = vpop.f32.mrb[0].mxu0
    %v554 = vpop.f32.mrb[0].mxu0
    %v555 = vadd.f32 %v395, %v554
    %v556 = vpop.f32.mrb[0].mxu0
    %557 = vmatprep.mubr.bf16.mxu0 0
    %558 = vmatmul.mubr.bf16.gmra.mrb[0].mxu0 %v366
    %v559 = vpop.f32.mrb[0].mxu0
    %v560 = vadd.f32 %v395, %v559
    %v561 = vpop.f32.mrb[0].mxu0
    %v562 = vpop.f32.mrb[0].mxu0
    %v563 = vadd.f32 %v395, %v562
    %v564 = vpop.f32.mrb[0].mxu0
    %565 = vmatprep.mubr.bf16.mxu0 0
    %566 = vmatmul.mubr.bf16.gmra.mrb[0].mxu0 %v367
    %v567 = vpop.f32.mrb[0].mxu0
    %v568 = vadd.f32 %v395, %v567
    %v569 = vpop.f32.mrb[0].mxu0
    %v570 = vpop.f32.mrb[0].mxu0
    %v571 = vadd.f32 %v395, %v570
    %v572 = vpop.f32.mrb[0].mxu0
    %573 = vmatprep.mubr.bf16.mxu0 0
    %574 = vmatmul.mubr.bf16.gmra.mrb[0].mxu0 %v368
    %v575 = vpop.f32.mrb[0].mxu0
    %v576 = vadd.f32 %v395, %v575
    %v577 = vpop.f32.mrb[0].mxu0
    %v578 = vpop.f32.mrb[0].mxu0
    %v579 = vadd.f32 %v395, %v578
    %v580 = vpop.f32.mrb[0].mxu0
    %581 = vmatprep.mubr.bf16.mxu0 0
    %582 = vmatmul.mubr.bf16.gmra.mrb[0].mxu0 %v369
    %v583 = vpop.f32.mrb[0].mxu0
    %v584 = vadd.f32 %v395, %v583
    %v585 = vpop.f32.mrb[0].mxu0
    %v586 = vpop.f32.mrb[0].mxu0
    %v587 = vadd.f32 %v395, %v586
    %v588 = vpop.f32.mrb[0].mxu0
    %589 = vmatprep.mubr.bf16.mxu0 0
    %590 = vmatmul.mubr.bf16.gmra.mrb[0].mxu0 %v370
    %v591 = vpop.f32.mrb[0].mxu0
    %v592 = vadd.f32 %v395, %v591
    %v593 = vpop.f32.mrb[0].mxu0
    %v594 = vpop.f32.mrb[0].mxu0
    %v595 = vadd.f32 %v395, %v594
    %v596 = vpop.f32.mrb[0].mxu0
    %597 = vmatprep.mubr.bf16.mxu0 0
    %598 = vmatmul.mubr.bf16.gmra.mrb[0].mxu0 %v371
    %v599 = vpop.f32.mrb[0].mxu0
    %v600 = vadd.f32 %v395, %v599
    %v601 = vpop.f32.mrb[0].mxu0
    %v602 = vpop.f32.mrb[0].mxu0
    %v603 = vadd.f32 %v395, %v602
    %v604 = vpop.f32.mrb[0].mxu0
    %605 = vdwg.mxu0
    %v606 = vmax.f32 %v480, 0.0
    %v607 = vmax.f32 %v483, 0.0
    %v608 = vmax.f32 %v488, 0.0
    %v609 = vmax.f32 %v491, 0.0
    %v610 = vmax.f32 %v496, 0.0
    %v611 = vmax.f32 %v499, 0.0
    %v612 = vmax.f32 %v504, 0.0
    %v613 = vmax.f32 %v507, 0.0
    %v614 = vmax.f32 %v512, 0.0
    %v615 = vmax.f32 %v515, 0.0
    %v616 = vmax.f32 %v520, 0.0
    %v617 = vmax.f32 %v523, 0.0
    %v618 = vmax.f32 %v528, 0.0
    %v619 = vmax.f32 %v531, 0.0
    %v620 = vmax.f32 %v536, 0.0
    %v621 = vmax.f32 %v539, 0.0
    %v622 = vmax.f32 %v544, 0.0
    %v623 = vmax.f32 %v547, 0.0
    %v624 = vmax.f32 %v552, 0.0
    %v625 = vmax.f32 %v555, 0.0
    %v626 = vmax.f32 %v560, 0.0
    %v627 = vmax.f32 %v563, 0.0
    %v628 = vmax.f32 %v568, 0.0
    %v629 = vmax.f32 %v571, 0.0
    %v630 = vmax.f32 %v576, 0.0
    %v631 = vmax.f32 %v579, 0.0
    %v632 = vmax.f32 %v584, 0.0
    %v633 = vmax.f32 %v587, 0.0
    %v634 = vmax.f32 %v592, 0.0
    %v635 = vmax.f32 %v595, 0.0
    %v636 = vmax.f32 %v600, 0.0
    %v637 = vmax.f32 %v603, 0.0
    %v638 = vpack.c.bf16 %v607, %v606
    %v639 = vpack.c.bf16 %v609, %v608
    %v640 = vpack.c.bf16 %v611, %v610
    %v641 = vpack.c.bf16 %v613, %v612
    %v642 = vpack.c.bf16 %v615, %v614
    %v643 = vpack.c.bf16 %v617, %v616
    %v644 = vpack.c.bf16 %v619, %v618
    %v645 = vpack.c.bf16 %v621, %v620
    %v646 = vpack.c.bf16 %v623, %v622
    %v647 = vpack.c.bf16 %v625, %v624
    %v648 = vpack.c.bf16 %v627, %v626
    %v649 = vpack.c.bf16 %v629, %v628
    %v650 = vpack.c.bf16 %v631, %v630
    %v651 = vpack.c.bf16 %v633, %v632
    %v652 = vpack.c.bf16 %v635, %v634
    %v653 = vpack.c.bf16 %v637, %v636
    %s654 = scalar_lea.vmem [#allocation5], 128
    %v655 = vld [vmem:[%s654] sm:$0xf]
    %v656 = vld [vmem:[%s654 + $0x4] sm:$0xf]
    %v657 = vld [vmem:[%s654 + $0x8] sm:$0xf]
    %v658 = vld [vmem:[%s654 + $0xc] sm:$0xf]
    %v659 = vld [vmem:[%s654 + $0x10] sm:$0xf]
    %v660 = vld [vmem:[%s654 + $0x14] sm:$0xf]
    %v661 = vld [vmem:[%s654 + $0x18] sm:$0xf]
    %v662 = vld [vmem:[%s654 + $0x1c] sm:$0xf]
    %v663 = vld [vmem:[%s654 + $0x20] sm:$0xf]
    %v664 = vld [vmem:[%s654 + $0x24] sm:$0xf]
    %v665 = vld [vmem:[%s654 + $0x28] sm:$0xf]
    %v666 = vld [vmem:[%s654 + $0x2c] sm:$0xf]
    %v667 = vld [vmem:[%s654 + $0x30] sm:$0xf]
    %v668 = vld [vmem:[%s654 + $0x34] sm:$0xf]
    %v669 = vld [vmem:[%s654 + $0x38] sm:$0xf]
    %v670 = vld [vmem:[%s654 + $0x3c] sm:$0xf]
    %s671 = scalar_lea.vmem %s2, 2
    %v672 = vld [vmem:[%s671] sm:$0x1]
    %v674 = vlaneseq
    %v675 = vshrl.u32 %v674, 7
    %v676 = vsub.s32 0, %v675
    %v677 = vrot.slane %v672, %v676
    %v695 = vunpack.c.l.b16 %v655
    %v696 = vunpack.c.l.b16 %v656
    %v697 = vunpack.c.l.b16 %v657
    %v698 = vunpack.c.l.b16 %v658
    %v699 = vunpack.c.l.b16 %v659
    %v700 = vunpack.c.l.b16 %v660
    %v701 = vunpack.c.l.b16 %v661
    %v702 = vunpack.c.l.b16 %v662
    %v703 = vunpack.c.l.b16 %v663
    %v704 = vunpack.c.l.b16 %v664
    %v705 = vunpack.c.l.b16 %v665
    %v706 = vunpack.c.l.b16 %v666
    %v707 = vunpack.c.l.b16 %v667
    %v708 = vunpack.c.l.b16 %v668
    %v709 = vunpack.c.l.b16 %v669
    %v710 = vunpack.c.l.b16 %v670
    %v711 = vpack.c.b16 %v696, %v695
    %v712 = vpack.c.b16 %v698, %v697
    %v713 = vpack.c.b16 %v700, %v699
    %v714 = vpack.c.b16 %v702, %v701
    %v715 = vpack.c.b16 %v704, %v703
    %v716 = vpack.c.b16 %v706, %v705
    %v717 = vpack.c.b16 %v708, %v707
    %v718 = vpack.c.b16 %v710, %v709
    %727 = vmatprep.subr.bf16.mxu0 0
    %728 = vmatpush1.bf16.msra.mxu0 %v711
    %729 = vmatprep.subr.bf16.mxu0 0
    %730 = vmatpush1.bf16.msra.mxu0 %v712
    %731 = vmatprep.subr.bf16.mxu0 0
    %732 = vmatpush1.bf16.msra.mxu0 %v713
    %733 = vmatprep.subr.bf16.mxu0 0
    %734 = vmatpush1.bf16.msra.mxu0 %v714
    %735 = vmatprep.subr.bf16.mxu0 0
    %736 = vmatpush1.bf16.msra.mxu0 %v715
    %737 = vmatprep.subr.bf16.mxu0 0
    %738 = vmatpush1.bf16.msra.mxu0 %v716
    %739 = vmatprep.subr.bf16.mxu0 0
    %740 = vmatpush1.bf16.msra.mxu0 %v717
    %741 = vmatprep.subr.bf16.mxu0 0
    %742 = vmatpush1.bf16.msra.mxu0 %v718
    %743 = vmatprep.subr.bf16.mxu0 0
    %744 = vmatpush1.bf16.msra.mxu0 0
    %745 = vmatprep.subr.bf16.mxu0 0
    %746 = vmatpush1.bf16.msra.mxu0 0
    %747 = vmatprep.subr.bf16.mxu0 0
    %748 = vmatpush1.bf16.msra.mxu0 0
    %749 = vmatprep.subr.bf16.mxu0 0
    %750 = vmatpush1.bf16.msra.mxu0 0
    %751 = vmatprep.subr.bf16.mxu0 0
    %752 = vmatpush1.bf16.msra.mxu0 0
    %753 = vmatprep.subr.bf16.mxu0 0
    %754 = vmatpush1.bf16.msra.mxu0 0
    %755 = vmatprep.subr.bf16.mxu0 0
    %756 = vmatpush1.bf16.msra.mxu0 0
    %757 = vmatprep.subr.bf16.mxu0 0
    %758 = vmatpush1.bf16.msra.mxu0 0
    %759 = vmatprep.mubr.bf16.mxu0 0
    %760 = vmatmul.mubr.bf16.gmra.mrb[0].mxu0 %v638
    %v761 = vpop.f32.mrb[0].mxu0
    %v762 = vadd.f32 %v677, %v761
    %v763 = vpop.f32.mrb[0].mxu0
    %v764 = vpop.f32.mrb[0].mxu0
    %v765 = vadd.f32 %v677, %v764
    %v766 = vpop.f32.mrb[0].mxu0
    %767 = vmatprep.mubr.bf16.mxu0 0
    %768 = vmatmul.mubr.bf16.gmra.mrb[0].mxu0 %v639
    %v769 = vpop.f32.mrb[0].mxu0
    %v770 = vadd.f32 %v677, %v769
    %v771 = vpop.f32.mrb[0].mxu0
    %v772 = vpop.f32.mrb[0].mxu0
    %v773 = vadd.f32 %v677, %v772
    %v774 = vpop.f32.mrb[0].mxu0
    %775 = vmatprep.mubr.bf16.mxu0 0
    %776 = vmatmul.mubr.bf16.gmra.mrb[0].mxu0 %v640
    %v777 = vpop.f32.mrb[0].mxu0
    %v778 = vadd.f32 %v677, %v777
    %v779 = vpop.f32.mrb[0].mxu0
    %v780 = vpop.f32.mrb[0].mxu0
    %v781 = vadd.f32 %v677, %v780
    %v782 = vpop.f32.mrb[0].mxu0
    %783 = vmatprep.mubr.bf16.mxu0 0
    %784 = vmatmul.mubr.bf16.gmra.mrb[0].mxu0 %v641
    %v785 = vpop.f32.mrb[0].mxu0
    %v786 = vadd.f32 %v677, %v785
    %v787 = vpop.f32.mrb[0].mxu0
    %v788 = vpop.f32.mrb[0].mxu0
    %v789 = vadd.f32 %v677, %v788
    %v790 = vpop.f32.mrb[0].mxu0
    %791 = vmatprep.mubr.bf16.mxu0 0
    %792 = vmatmul.mubr.bf16.gmra.mrb[0].mxu0 %v642
    %v793 = vpop.f32.mrb[0].mxu0
    %v794 = vadd.f32 %v677, %v793
    %v795 = vpop.f32.mrb[0].mxu0
    %v796 = vpop.f32.mrb[0].mxu0
    %v797 = vadd.f32 %v677, %v796
    %v798 = vpop.f32.mrb[0].mxu0
    %799 = vmatprep.mubr.bf16.mxu0 0
    %800 = vmatmul.mubr.bf16.gmra.mrb[0].mxu0 %v643
    %v801 = vpop.f32.mrb[0].mxu0
    %v802 = vadd.f32 %v677, %v801
    %v803 = vpop.f32.mrb[0].mxu0
    %v804 = vpop.f32.mrb[0].mxu0
    %v805 = vadd.f32 %v677, %v804
    %v806 = vpop.f32.mrb[0].mxu0
    %807 = vmatprep.mubr.bf16.mxu0 0
    %808 = vmatmul.mubr.bf16.gmra.mrb[0].mxu0 %v644
    %v809 = vpop.f32.mrb[0].mxu0
    %v810 = vadd.f32 %v677, %v809
    %v811 = vpop.f32.mrb[0].mxu0
    %v812 = vpop.f32.mrb[0].mxu0
    %v813 = vadd.f32 %v677, %v812
    %v814 = vpop.f32.mrb[0].mxu0
    %815 = vmatprep.mubr.bf16.mxu0 0
    %816 = vmatmul.mubr.bf16.gmra.mrb[0].mxu0 %v645
    %v817 = vpop.f32.mrb[0].mxu0
    %v818 = vadd.f32 %v677, %v817
    %v819 = vpop.f32.mrb[0].mxu0
    %v820 = vpop.f32.mrb[0].mxu0
    %v821 = vadd.f32 %v677, %v820
    %v822 = vpop.f32.mrb[0].mxu0
    %823 = vmatprep.mubr.bf16.mxu0 0
    %824 = vmatmul.mubr.bf16.gmra.mrb[0].mxu0 %v646
    %v825 = vpop.f32.mrb[0].mxu0
    %v826 = vadd.f32 %v677, %v825
    %v827 = vpop.f32.mrb[0].mxu0
    %v828 = vpop.f32.mrb[0].mxu0
    %v829 = vadd.f32 %v677, %v828
    %v830 = vpop.f32.mrb[0].mxu0
    %831 = vmatprep.mubr.bf16.mxu0 0
    %832 = vmatmul.mubr.bf16.gmra.mrb[0].mxu0 %v647
    %v833 = vpop.f32.mrb[0].mxu0
    %v834 = vadd.f32 %v677, %v833
    %v835 = vpop.f32.mrb[0].mxu0
    %v836 = vpop.f32.mrb[0].mxu0
    %v837 = vadd.f32 %v677, %v836
    %v838 = vpop.f32.mrb[0].mxu0
    %839 = vmatprep.mubr.bf16.mxu0 0
    %840 = vmatmul.mubr.bf16.gmra.mrb[0].mxu0 %v648
    %v841 = vpop.f32.mrb[0].mxu0
    %v842 = vadd.f32 %v677, %v841
    %v843 = vpop.f32.mrb[0].mxu0
    %v844 = vpop.f32.mrb[0].mxu0
    %v845 = vadd.f32 %v677, %v844
    %v846 = vpop.f32.mrb[0].mxu0
    %847 = vmatprep.mubr.bf16.mxu0 0
    %848 = vmatmul.mubr.bf16.gmra.mrb[0].mxu0 %v649
    %v849 = vpop.f32.mrb[0].mxu0
    %v850 = vadd.f32 %v677, %v849
    %v851 = vpop.f32.mrb[0].mxu0
    %v852 = vpop.f32.mrb[0].mxu0
    %v853 = vadd.f32 %v677, %v852
    %v854 = vpop.f32.mrb[0].mxu0
    %855 = vmatprep.mubr.bf16.mxu0 0
    %856 = vmatmul.mubr.bf16.gmra.mrb[0].mxu0 %v650
    %v857 = vpop.f32.mrb[0].mxu0
    %v858 = vadd.f32 %v677, %v857
    %v859 = vpop.f32.mrb[0].mxu0
    %v860 = vpop.f32.mrb[0].mxu0
    %v861 = vadd.f32 %v677, %v860
    %v862 = vpop.f32.mrb[0].mxu0
    %863 = vmatprep.mubr.bf16.mxu0 0
    %864 = vmatmul.mubr.bf16.gmra.mrb[0].mxu0 %v651
    %v865 = vpop.f32.mrb[0].mxu0
    %v866 = vadd.f32 %v677, %v865
    %v867 = vpop.f32.mrb[0].mxu0
    %v868 = vpop.f32.mrb[0].mxu0
    %v869 = vadd.f32 %v677, %v868
    %v870 = vpop.f32.mrb[0].mxu0
    %871 = vmatprep.mubr.bf16.mxu0 0
    %872 = vmatmul.mubr.bf16.gmra.mrb[0].mxu0 %v652
    %v873 = vpop.f32.mrb[0].mxu0
    %v874 = vadd.f32 %v677, %v873
    %v875 = vpop.f32.mrb[0].mxu0
    %v876 = vpop.f32.mrb[0].mxu0
    %v877 = vadd.f32 %v677, %v876
    %v878 = vpop.f32.mrb[0].mxu0
    %879 = vmatprep.mubr.bf16.mxu0 0
    %880 = vmatmul.mubr.bf16.gmra.mrb[0].mxu0 %v653
    %v881 = vpop.f32.mrb[0].mxu0
    %v882 = vadd.f32 %v677, %v881
    %v883 = vpop.f32.mrb[0].mxu0
    %v884 = vpop.f32.mrb[0].mxu0
    %v885 = vadd.f32 %v677, %v884
    %v886 = vpop.f32.mrb[0].mxu0
    %887 = vdwg.mxu0
    %v888 = vmax.f32 %v762, 0.0
    %v889 = vmax.f32 %v765, 0.0
    %v890 = vmax.f32 %v770, 0.0
    %v891 = vmax.f32 %v773, 0.0
    %v892 = vmax.f32 %v778, 0.0
    %v893 = vmax.f32 %v781, 0.0
    %v894 = vmax.f32 %v786, 0.0
    %v895 = vmax.f32 %v789, 0.0
    %v896 = vmax.f32 %v794, 0.0
    %v897 = vmax.f32 %v797, 0.0
    %v898 = vmax.f32 %v802, 0.0
    %v899 = vmax.f32 %v805, 0.0
    %v900 = vmax.f32 %v810, 0.0
    %v901 = vmax.f32 %v813, 0.0
    %v902 = vmax.f32 %v818, 0.0
    %v903 = vmax.f32 %v821, 0.0
    %v904 = vmax.f32 %v826, 0.0
    %v905 = vmax.f32 %v829, 0.0
    %v906 = vmax.f32 %v834, 0.0
    %v907 = vmax.f32 %v837, 0.0
    %v908 = vmax.f32 %v842, 0.0
    %v909 = vmax.f32 %v845, 0.0
    %v910 = vmax.f32 %v850, 0.0
    %v911 = vmax.f32 %v853, 0.0
    %v912 = vmax.f32 %v858, 0.0
    %v913 = vmax.f32 %v861, 0.0
    %v914 = vmax.f32 %v866, 0.0
    %v915 = vmax.f32 %v869, 0.0
    %v916 = vmax.f32 %v874, 0.0
    %v917 = vmax.f32 %v877, 0.0
    %v918 = vmax.f32 %v882, 0.0
    %v919 = vmax.f32 %v885, 0.0
    %v920 = vpack.c.bf16 %v889, %v888
    %v921 = vpack.c.bf16 %v891, %v890
    %v922 = vpack.c.bf16 %v893, %v892
    %v923 = vpack.c.bf16 %v895, %v894
    %v924 = vpack.c.bf16 %v897, %v896
    %v925 = vpack.c.bf16 %v899, %v898
    %v926 = vpack.c.bf16 %v901, %v900
    %v927 = vpack.c.bf16 %v903, %v902
    %v928 = vpack.c.bf16 %v905, %v904
    %v929 = vpack.c.bf16 %v907, %v906
    %v930 = vpack.c.bf16 %v909, %v908
    %v931 = vpack.c.bf16 %v911, %v910
    %v932 = vpack.c.bf16 %v913, %v912
    %v933 = vpack.c.bf16 %v915, %v914
    %v934 = vpack.c.bf16 %v917, %v916
    %v935 = vpack.c.bf16 %v919, %v918
    %s936 = scalar_lea.vmem [#allocation5], 192
    %v937 = vld [vmem:[%s936] sm:$0xf]
    %v938 = vld [vmem:[%s936 + $0x4] sm:$0xf]
    %v939 = vld [vmem:[%s936 + $0x8] sm:$0xf]
    %v940 = vld [vmem:[%s936 + $0xc] sm:$0xf]
    %v941 = vld [vmem:[%s936 + $0x10] sm:$0xf]
    %v942 = vld [vmem:[%s936 + $0x14] sm:$0xf]
    %v943 = vld [vmem:[%s936 + $0x18] sm:$0xf]
    %v944 = vld [vmem:[%s936 + $0x1c] sm:$0xf]
    %v945 = vld [vmem:[%s936 + $0x20] sm:$0xf]
    %v946 = vld [vmem:[%s936 + $0x24] sm:$0xf]
    %v947 = vld [vmem:[%s936 + $0x28] sm:$0xf]
    %v948 = vld [vmem:[%s936 + $0x2c] sm:$0xf]
    %v949 = vld [vmem:[%s936 + $0x30] sm:$0xf]
    %v950 = vld [vmem:[%s936 + $0x34] sm:$0xf]
    %v951 = vld [vmem:[%s936 + $0x38] sm:$0xf]
    %v952 = vld [vmem:[%s936 + $0x3c] sm:$0xf]
    %s953 = scalar_lea.vmem %s2, 3
    %v954 = vld [vmem:[%s953] sm:$0x1]
    %v956 = vlaneseq
    %v957 = vshrl.u32 %v956, 7
    %v958 = vsub.s32 0, %v957
    %v959 = vrot.slane %v954, %v958
    %v977 = vunpack.c.l.b16 %v937
    %v978 = vunpack.c.l.b16 %v938
    %v979 = vunpack.c.l.b16 %v939
    %v980 = vunpack.c.l.b16 %v940
    %v981 = vunpack.c.l.b16 %v941
    %v982 = vunpack.c.l.b16 %v942
    %v983 = vunpack.c.l.b16 %v943
    %v984 = vunpack.c.l.b16 %v944
    %v985 = vunpack.c.l.b16 %v945
    %v986 = vunpack.c.l.b16 %v946
    %v987 = vunpack.c.l.b16 %v947
    %v988 = vunpack.c.l.b16 %v948
    %v989 = vunpack.c.l.b16 %v949
    %v990 = vunpack.c.l.b16 %v950
    %v991 = vunpack.c.l.b16 %v951
    %v992 = vunpack.c.l.b16 %v952
    %v993 = vpack.c.b16 %v978, %v977
    %v994 = vpack.c.b16 %v980, %v979
    %v995 = vpack.c.b16 %v982, %v981
    %v996 = vpack.c.b16 %v984, %v983
    %v997 = vpack.c.b16 %v986, %v985
    %v998 = vpack.c.b16 %v988, %v987
    %v999 = vpack.c.b16 %v990, %v989
    %v1000 = vpack.c.b16 %v992, %v991
    %1009 = vmatprep.subr.bf16.mxu0 0
    %1010 = vmatpush1.bf16.msra.mxu0 %v993
    %1011 = vmatprep.subr.bf16.mxu0 0
    %1012 = vmatpush1.bf16.msra.mxu0 %v994
    %1013 = vmatprep.subr.bf16.mxu0 0
    %1014 = vmatpush1.bf16.msra.mxu0 %v995
    %1015 = vmatprep.subr.bf16.mxu0 0
    %1016 = vmatpush1.bf16.msra.mxu0 %v996
    %1017 = vmatprep.subr.bf16.mxu0 0
    %1018 = vmatpush1.bf16.msra.mxu0 %v997
    %1019 = vmatprep.subr.bf16.mxu0 0
    %1020 = vmatpush1.bf16.msra.mxu0 %v998
    %1021 = vmatprep.subr.bf16.mxu0 0
    %1022 = vmatpush1.bf16.msra.mxu0 %v999
    %1023 = vmatprep.subr.bf16.mxu0 0
    %1024 = vmatpush1.bf16.msra.mxu0 %v1000
    %1025 = vmatprep.subr.bf16.mxu0 0
    %1026 = vmatpush1.bf16.msra.mxu0 0
    %1027 = vmatprep.subr.bf16.mxu0 0
    %1028 = vmatpush1.bf16.msra.mxu0 0
    %1029 = vmatprep.subr.bf16.mxu0 0
    %1030 = vmatpush1.bf16.msra.mxu0 0
    %1031 = vmatprep.subr.bf16.mxu0 0
    %1032 = vmatpush1.bf16.msra.mxu0 0
    %1033 = vmatprep.subr.bf16.mxu0 0
    %1034 = vmatpush1.bf16.msra.mxu0 0
    %1035 = vmatprep.subr.bf16.mxu0 0
    %1036 = vmatpush1.bf16.msra.mxu0 0
    %1037 = vmatprep.subr.bf16.mxu0 0
    %1038 = vmatpush1.bf16.msra.mxu0 0
    %1039 = vmatprep.subr.bf16.mxu0 0
    %1040 = vmatpush1.bf16.msra.mxu0 0
    %1041 = vmatprep.mubr.bf16.mxu0 0
    %1042 = vmatmul.mubr.bf16.gmra.mrb[0].mxu0 %v920
    %v1043 = vpop.f32.mrb[0].mxu0
    %v1044 = vadd.f32 %v959, %v1043
    %v1045 = vpop.f32.mrb[0].mxu0
    %v1046 = vpop.f32.mrb[0].mxu0
    %v1047 = vadd.f32 %v959, %v1046
    %v1048 = vpop.f32.mrb[0].mxu0
    %1049 = vmatprep.mubr.bf16.mxu0 0
    %1050 = vmatmul.mubr.bf16.gmra.mrb[0].mxu0 %v921
    %v1051 = vpop.f32.mrb[0].mxu0
    %v1052 = vadd.f32 %v959, %v1051
    %v1053 = vpop.f32.mrb[0].mxu0
    %v1054 = vpop.f32.mrb[0].mxu0
    %v1055 = vadd.f32 %v959, %v1054
    %v1056 = vpop.f32.mrb[0].mxu0
    %1057 = vmatprep.mubr.bf16.mxu0 0
    %1058 = vmatmul.mubr.bf16.gmra.mrb[0].mxu0 %v922
    %v1059 = vpop.f32.mrb[0].mxu0
    %v1060 = vadd.f32 %v959, %v1059
    %v1061 = vpop.f32.mrb[0].mxu0
    %v1062 = vpop.f32.mrb[0].mxu0
    %v1063 = vadd.f32 %v959, %v1062
    %v1064 = vpop.f32.mrb[0].mxu0
    %1065 = vmatprep.mubr.bf16.mxu0 0
    %1066 = vmatmul.mubr.bf16.gmra.mrb[0].mxu0 %v923
    %v1067 = vpop.f32.mrb[0].mxu0
    %v1068 = vadd.f32 %v959, %v1067
    %v1069 = vpop.f32.mrb[0].mxu0
    %v1070 = vpop.f32.mrb[0].mxu0
    %v1071 = vadd.f32 %v959, %v1070
    %v1072 = vpop.f32.mrb[0].mxu0
    %1073 = vmatprep.mubr.bf16.mxu0 0
    %1074 = vmatmul.mubr.bf16.gmra.mrb[0].mxu0 %v924
    %v1075 = vpop.f32.mrb[0].mxu0
    %v1076 = vadd.f32 %v959, %v1075
    %v1077 = vpop.f32.mrb[0].mxu0
    %v1078 = vpop.f32.mrb[0].mxu0
    %v1079 = vadd.f32 %v959, %v1078
    %v1080 = vpop.f32.mrb[0].mxu0
    %1081 = vmatprep.mubr.bf16.mxu0 0
    %1082 = vmatmul.mubr.bf16.gmra.mrb[0].mxu0 %v925
    %v1083 = vpop.f32.mrb[0].mxu0
    %v1084 = vadd.f32 %v959, %v1083
    %v1085 = vpop.f32.mrb[0].mxu0
    %v1086 = vpop.f32.mrb[0].mxu0
    %v1087 = vadd.f32 %v959, %v1086
    %v1088 = vpop.f32.mrb[0].mxu0
    %1089 = vmatprep.mubr.bf16.mxu0 0
    %1090 = vmatmul.mubr.bf16.gmra.mrb[0].mxu0 %v926
    %v1091 = vpop.f32.mrb[0].mxu0
    %v1092 = vadd.f32 %v959, %v1091
    %v1093 = vpop.f32.mrb[0].mxu0
    %v1094 = vpop.f32.mrb[0].mxu0
    %v1095 = vadd.f32 %v959, %v1094
    %v1096 = vpop.f32.mrb[0].mxu0
    %1097 = vmatprep.mubr.bf16.mxu0 0
    %1098 = vmatmul.mubr.bf16.gmra.mrb[0].mxu0 %v927
    %v1099 = vpop.f32.mrb[0].mxu0
    %v1100 = vadd.f32 %v959, %v1099
    %v1101 = vpop.f32.mrb[0].mxu0
    %v1102 = vpop.f32.mrb[0].mxu0
    %v1103 = vadd.f32 %v959, %v1102
    %v1104 = vpop.f32.mrb[0].mxu0
    %1105 = vmatprep.mubr.bf16.mxu0 0
    %1106 = vmatmul.mubr.bf16.gmra.mrb[0].mxu0 %v928
    %v1107 = vpop.f32.mrb[0].mxu0
    %v1108 = vadd.f32 %v959, %v1107
    %v1109 = vpop.f32.mrb[0].mxu0
    %v1110 = vpop.f32.mrb[0].mxu0
    %v1111 = vadd.f32 %v959, %v1110
    %v1112 = vpop.f32.mrb[0].mxu0
    %1113 = vmatprep.mubr.bf16.mxu0 0
    %1114 = vmatmul.mubr.bf16.gmra.mrb[0].mxu0 %v929
    %v1115 = vpop.f32.mrb[0].mxu0
    %v1116 = vadd.f32 %v959, %v1115
    %v1117 = vpop.f32.mrb[0].mxu0
    %v1118 = vpop.f32.mrb[0].mxu0
    %v1119 = vadd.f32 %v959, %v1118
    %v1120 = vpop.f32.mrb[0].mxu0
    %1121 = vmatprep.mubr.bf16.mxu0 0
    %1122 = vmatmul.mubr.bf16.gmra.mrb[0].mxu0 %v930
    %v1123 = vpop.f32.mrb[0].mxu0
    %v1124 = vadd.f32 %v959, %v1123
    %v1125 = vpop.f32.mrb[0].mxu0
    %v1126 = vpop.f32.mrb[0].mxu0
    %v1127 = vadd.f32 %v959, %v1126
    %v1128 = vpop.f32.mrb[0].mxu0
    %1129 = vmatprep.mubr.bf16.mxu0 0
    %1130 = vmatmul.mubr.bf16.gmra.mrb[0].mxu0 %v931
    %v1131 = vpop.f32.mrb[0].mxu0
    %v1132 = vadd.f32 %v959, %v1131
    %v1133 = vpop.f32.mrb[0].mxu0
    %v1134 = vpop.f32.mrb[0].mxu0
    %v1135 = vadd.f32 %v959, %v1134
    %v1136 = vpop.f32.mrb[0].mxu0
    %1137 = vmatprep.mubr.bf16.mxu0 0
    %1138 = vmatmul.mubr.bf16.gmra.mrb[0].mxu0 %v932
    %v1139 = vpop.f32.mrb[0].mxu0
    %v1140 = vadd.f32 %v959, %v1139
    %v1141 = vpop.f32.mrb[0].mxu0
    %v1142 = vpop.f32.mrb[0].mxu0
    %v1143 = vadd.f32 %v959, %v1142
    %v1144 = vpop.f32.mrb[0].mxu0
    %1145 = vmatprep.mubr.bf16.mxu0 0
    %1146 = vmatmul.mubr.bf16.gmra.mrb[0].mxu0 %v933
    %v1147 = vpop.f32.mrb[0].mxu0
    %v1148 = vadd.f32 %v959, %v1147
    %v1149 = vpop.f32.mrb[0].mxu0
    %v1150 = vpop.f32.mrb[0].mxu0
    %v1151 = vadd.f32 %v959, %v1150
    %v1152 = vpop.f32.mrb[0].mxu0
    %1153 = vmatprep.mubr.bf16.mxu0 0
    %1154 = vmatmul.mubr.bf16.gmra.mrb[0].mxu0 %v934
    %v1155 = vpop.f32.mrb[0].mxu0
    %v1156 = vadd.f32 %v959, %v1155
    %v1157 = vpop.f32.mrb[0].mxu0
    %v1158 = vpop.f32.mrb[0].mxu0
    %v1159 = vadd.f32 %v959, %v1158
    %v1160 = vpop.f32.mrb[0].mxu0
    %1161 = vmatprep.mubr.bf16.mxu0 0
    %1162 = vmatmul.mubr.bf16.gmra.mrb[0].mxu0 %v935
    %v1163 = vpop.f32.mrb[0].mxu0
    %v1164 = vadd.f32 %v959, %v1163
    %v1165 = vpop.f32.mrb[0].mxu0
    %v1166 = vpop.f32.mrb[0].mxu0
    %v1167 = vadd.f32 %v959, %v1166
    %v1168 = vpop.f32.mrb[0].mxu0
    %1169 = vdwg.mxu0
    %1170 = vst [vmem:[#allocation7] sm:$0xff] %v1044
    %1171 = vst [vmem:[#allocation7 + $0x8] sm:$0xff] %v1047
    %1172 = vst [vmem:[#allocation7 + $0x10] sm:$0xff] %v1052
    %1173 = vst [vmem:[#allocation7 + $0x18] sm:$0xff] %v1055
    %1174 = vst [vmem:[#allocation7 + $0x20] sm:$0xff] %v1060
    %1175 = vst [vmem:[#allocation7 + $0x28] sm:$0xff] %v1063
    %1176 = vst [vmem:[#allocation7 + $0x30] sm:$0xff] %v1068
    %1177 = vst [vmem:[#allocation7 + $0x38] sm:$0xff] %v1071
    %1178 = vst [vmem:[#allocation7 + $0x40] sm:$0xff] %v1076
    %1179 = vst [vmem:[#allocation7 + $0x48] sm:$0xff] %v1079
    %1180 = vst [vmem:[#allocation7 + $0x50] sm:$0xff] %v1084
    %1181 = vst [vmem:[#allocation7 + $0x58] sm:$0xff] %v1087
    %1182 = vst [vmem:[#allocation7 + $0x60] sm:$0xff] %v1092
    %1183 = vst [vmem:[#allocation7 + $0x68] sm:$0xff] %v1095
    %1184 = vst [vmem:[#allocation7 + $0x70] sm:$0xff] %v1100
    %1185 = vst [vmem:[#allocation7 + $0x78] sm:$0xff] %v1103
    %1186 = vst [vmem:[#allocation7 + $0x80] sm:$0xff] %v1108
    %1187 = vst [vmem:[#allocation7 + $0x88] sm:$0xff] %v1111
    %1188 = vst [vmem:[#allocation7 + $0x90] sm:$0xff] %v1116
    %1189 = vst [vmem:[#allocation7 + $0x98] sm:$0xff] %v1119
    %1190 = vst [vmem:[#allocation7 + $0xa0] sm:$0xff] %v1124
    %1191 = vst [vmem:[#allocation7 + $0xa8] sm:$0xff] %v1127
    %1192 = vst [vmem:[#allocation7 + $0xb0] sm:$0xff] %v1132
    %1193 = vst [vmem:[#allocation7 + $0xb8] sm:$0xff] %v1135
    %1194 = vst [vmem:[#allocation7 + $0xc0] sm:$0xff] %v1140
    %1195 = vst [vmem:[#allocation7 + $0xc8] sm:$0xff] %v1143
    %1196 = vst [vmem:[#allocation7 + $0xd0] sm:$0xff] %v1148
    %1197 = vst [vmem:[#allocation7 + $0xd8] sm:$0xff] %v1151
    %1198 = vst [vmem:[#allocation7 + $0xe0] sm:$0xff] %v1156
    %1199 = vst [vmem:[#allocation7 + $0xe8] sm:$0xff] %v1159
    %1200 = vst [vmem:[#allocation7 + $0xf0] sm:$0xff] %v1164
    %1201 = vst [vmem:[#allocation7 + $0xf8] sm:$0xff] %v1167
    // Predicated region
    $region22: #{tpu_custom_call.1} parent=1 // pred_check
      _
    $region23: #{tpu_custom_call.1} parent=1 // pred_check_branch
      %1203 = sbr.rel (0) target = $region25
    $region24: #{tpu_custom_call.1} parent=1 // pred_region
      %s1205 = ssub.s32 4096, 4096
      %1206 = vsyncadd [#allocation4], %s1205
      %s1207 = sshll.u32 [#allocation7], 4
      %s1208 = int_to_ptr.vmem [resolvable:$true] %s1207
      %1213 = dma.vmem_to_hbm [thread:$0]  %s1208, 4096, %s3, [#allocation4], 128, 128, 8
    $region25: #{tpu_custom_call.1} parent=1 // pred_fallthru
      _
    // Predicated region
    $region26: #{tpu_custom_call.1} parent=1 // pred_check
      _
    $region27: #{tpu_custom_call.1} parent=1 // pred_check_branch
      %1215 = sbr.rel (0) target = $region29
    $region28: #{tpu_custom_call.1} parent=1 // pred_region
      %1216 = dma.done [#allocation4], 4096
    $region29: #{tpu_custom_call.1} parent=1 // pred_fallthru
      _
    %1217 = vsyncpa [#allocation3], 1
    %1218 = vsyncpa [#allocation6], 1
    %1219 = vsyncpa [#allocation4], 1

</llo_original>
